<compile_context>
chip_gen: v5e
topology: v5e:2x2
jax: 0.10.0
libtpu: 0.0.40
codegen_flags: <defaults>
</compile_context>

<pallas_src>
import math
import functools
from typing import NamedTuple, Optional

import jax
import jax.numpy as jnp
from jax.experimental import pallas as pl
from jax.experimental.pallas import tpu as pltpu


def _round_up(x: int, m: int) -> int:
    return (x + m - 1) // m * m


def _tpu_generation() -> Optional[str]:
    try:
        kind = jax.devices()[0].device_kind.lower()
    except Exception:
        return None
    for tag in ("v7", "v6", "v5"):
        if tag in kind:
            return tag
    return None


# Per-generation defaults (batch tile cap, scoped VMEM limit).
_DEFAULT_BLOCK_B = {"v5": 2048, "v6": 2048, "v7": 1024}
_DEFAULT_VMEM = {"v5": 64 << 20, "v6": 96 << 20, "v7": 48 << 20}


class TimestepEmbeddingParams(NamedTuple):
    trig: jax.Array      # (2, E_pad) f32: row 0 = freqs, row 1 = phase
    w1: jax.Array        # (E_pad, H_pad) param_dtype
    b1: jax.Array        # (1, H_pad) f32
    w2: jax.Array        # (H_pad, O_pad) param_dtype
    b2: jax.Array        # (1, O_pad) f32
    embedding_dim: int
    hidden_dim: int
    output_dim: int


def prepare_timestep_embedding_params(w1, b1, w2, b2, *, embedding_dim,
                                      max_positions=10000,
                                      param_dtype=jnp.bfloat16):
    """One-time (module init) padding / casting of the MLP weights and
    precompute of the sinusoidal frequency/phase table.

    w1:(embedding_dim, hidden_dim), w2:(hidden_dim, output_dim)."""
    assert w1.shape[0] == embedding_dim, (w1.shape, embedding_dim)
    hidden_dim = w1.shape[1]
    output_dim = w2.shape[1]

    half_dim = embedding_dim // 2
    # Guard the log(max_positions)/(half_dim-1) division (the PyTorch ref
    # would also divide by zero here).
    assert half_dim >= 2, "embedding_dim must be >= 4"

    # Lane-dense padded dims (multiples of 128).
    E_pad = _round_up(embedding_dim, 128)
    H_pad = _round_up(hidden_dim, 128)
    O_pad = _round_up(output_dim, 128)

    # freqs/phase table: emb[:, j] = sin(t * freqs[j] + phase[j]); phase=pi/2
    # for the "cos" half. Padded columns (and the odd-dim zero column) have
    # freq=0, phase=0 -> sin(0)=0, matching F.pad in the reference.
    scale = math.log(max_positions) / (half_dim - 1)
    j = jnp.arange(E_pad, dtype=jnp.float32)
    base_idx = jnp.where(j < half_dim, j, j - half_dim)
    freqs = jnp.where(j < 2 * half_dim, jnp.exp(-scale * base_idx), 0.0)
    phase = jnp.where((j >= half_dim) & (j < 2 * half_dim),
                      jnp.float32(math.pi / 2.0), 0.0)
    trig = jnp.stack([freqs, phase], axis=0)                 # (2, E_pad)

    w1p = jnp.zeros((E_pad, H_pad), param_dtype)
    w1p = w1p.at[:embedding_dim, :hidden_dim].set(w1.astype(param_dtype))
    b1p = jnp.zeros((1, H_pad), jnp.float32).at[0, :hidden_dim].set(
        b1.astype(jnp.float32))
    w2p = jnp.zeros((H_pad, O_pad), param_dtype)
    w2p = w2p.at[:hidden_dim, :output_dim].set(w2.astype(param_dtype))
    b2p = jnp.zeros((1, O_pad), jnp.float32).at[0, :output_dim].set(
        b2.astype(jnp.float32))

    return TimestepEmbeddingParams(trig, w1p, b1p, w2p, b2p,
                                   embedding_dim, hidden_dim, output_dim)


def timestep_embedding_kernel(t_ref, trig_ref, w1_ref, b1_ref, w2_ref, b2_ref,
                              o_ref, *, compute_dtype):
    # ---- sinusoidal timestep embedding: single full-width sin ----
    t = t_ref[...]                                       # (TB, 1) f32
    freqs = trig_ref[0:1, :]                             # (1, E_pad)
    phase = trig_ref[1:2, :]                             # (1, E_pad)
    emb = jnp.sin(t * freqs + phase)                     # (TB, E_pad) f32

    # ---- MLP: Linear -> LeakyReLU(0.2) -> Linear -> LeakyReLU(0.2) ----
    # compute_dtype MXU operands, f32 accumulation; bias + activation in f32.
    h = jnp.dot(emb.astype(compute_dtype), w1_ref[...],
                preferred_element_type=jnp.float32) + b1_ref[...]
    # LeakyReLU(0.2): maximum(x, 0.2*x) is equivalent ONLY for slope in (0,1).
    h = jnp.maximum(h, 0.2 * h)

    out = jnp.dot(h.astype(compute_dtype), w2_ref[...],
                  preferred_element_type=jnp.float32) + b2_ref[...]
    out = jnp.maximum(out, 0.2 * out)

    o_ref[...] = out.astype(o_ref.dtype)


def timestep_embedding(timesteps, params: TimestepEmbeddingParams, *,
                       block_b=None, vmem_limit_bytes=None,
                       out_dtype=jnp.float32):
    """timesteps: (B,) float/int array. Returns (B, output_dim) out_dtype."""
    B = timesteps.shape[0]
    E_pad, H_pad = params.w1.shape
    O_pad = params.w2.shape[1]
    output_dim = params.output_dim
    compute_dtype = params.w1.dtype

    gen = _tpu_generation()
    if block_b is None:
        block_b = _DEFAULT_BLOCK_B.get(gen, 1024)
    if vmem_limit_bytes is None:
        vmem_limit_bytes = _DEFAULT_VMEM.get(gen, 64 << 20)

    # --- batch tiling: big tiles, minimal padding, >=2 tiles on v7x (2 TCs) ---
    min_tiles = 2 if (gen == "v7" and B >= 16) else 1
    n_tiles = max(pl.cdiv(B, block_b), min_tiles)
    TB = _round_up(pl.cdiv(B, n_tiles), 8)
    B_pad = _round_up(B, TB)
    grid = (B_pad // TB,)

    t_flat = timesteps.astype(jnp.float32)
    if B_pad == B:
        t_col = t_flat.reshape(B, 1)
    else:
        t_col = jnp.zeros((B_pad, 1), jnp.float32).at[:B, 0].set(t_flat)

    kernel = functools.partial(timestep_embedding_kernel,
                               compute_dtype=compute_dtype)

    def _make_call(resident_mode):
        def rspec(shape):
            if resident_mode is None:
                return pl.BlockSpec(shape, lambda i: (0, 0))
            return pl.BlockSpec(shape, lambda i: (0, 0),
                                pipeline_mode=resident_mode)

        return pl.pallas_call(
            kernel,
            out_shape=jax.ShapeDtypeStruct((B_pad, O_pad), out_dtype),
            grid_spec=pltpu.PrefetchScalarGridSpec(
                num_scalar_prefetch=0,
                grid=grid,
                in_specs=[
                    pl.BlockSpec((TB, 1), lambda i: (i, 0)),   # timesteps
                    rspec((2, E_pad)),                         # freqs/phase
                    rspec((E_pad, H_pad)),                     # W1
                    rspec((1, H_pad)),                         # b1
                    rspec((H_pad, O_pad)),                     # W2
                    rspec((1, O_pad)),                         # b2
                ],
                out_specs=pl.BlockSpec((TB, O_pad), lambda i: (i, 0)),
            ),
            compiler_params=pltpu.CompilerParams(
                dimension_semantics=("parallel",),
                vmem_limit_bytes=vmem_limit_bytes,
            ),
        )

    args = (t_col, params.trig, params.w1, params.b1, params.w2, params.b2)
    try:
        # Resident (constant index_map) operands single-buffered: halves their
        # VMEM footprint, freeing room for bigger batch tiles.
        out_padded = _make_call(pl.Buffered(1))(*args)
    except Exception:
        out_padded = _make_call(None)(*args)

    if B_pad == B and O_pad == output_dim:
        return out_padded
    return out_padded[:B, :output_dim]


def _ref_forward(timesteps, w1, b1, w2, b2, embedding_dim, max_positions=10000,
                 cast_dtype=None):
    """Pure-JAX reference mirroring the PyTorch module (optionally with
    cast matmul operands to match the optimized kernel's dtype)."""
    half_dim = embedding_dim // 2
    scale = math.log(max_positions) / (half_dim - 1)
    freqs = jnp.exp(jnp.arange(half_dim, dtype=jnp.float32) * -scale)
    arg = timesteps.astype(jnp.float32)[:, None] * freqs[None, :]
    emb = jnp.concatenate([jnp.sin(arg), jnp.cos(arg)], axis=1)
    if embedding_dim % 2 == 1:
        emb = jnp.pad(emb, ((0, 0), (0, 1)))
    if cast_dtype is not None:
        emb, w1, w2 = (x.astype(cast_dtype) for x in (emb, w1, w2))
    h = jnp.dot(emb, w1, preferred_element_type=jnp.float32) + b1
    h = jnp.where(h > 0, h, 0.2 * h)
    if cast_dtype is not None:
        h = h.astype(cast_dtype)
    out = jnp.dot(h, w2, preferred_element_type=jnp.float32) + b2
    return jnp.where(out > 0, out, 0.2 * out)


if __name__ == "__main__":
    # Small, module-consistent shapes.
    B = 8
    embedding_dim = 32
    hidden_dim = 64
    output_dim = 32

    key = jax.random.PRNGKey(0)
    k_t, k_w1, k_b1, k_w2, k_b2, k_t2 = jax.random.split(key, 6)

    timesteps = jax.random.uniform(k_t, (B,), jnp.float32, minval=0.0,
                                   maxval=1000.0)
    lim1 = 1.0 / math.sqrt(embedding_dim)
    lim2 = 1.0 / math.sqrt(hidden_dim)
    w1 = jax.random.uniform(k_w1, (embedding_dim, hidden_dim), jnp.float32,
                            -lim1, lim1)
    b1 = jax.random.uniform(k_b1, (hidden_dim,), jnp.float32, -lim1, lim1)
    w2 = jax.random.uniform(k_w2, (hidden_dim, output_dim), jnp.float32,
                            -lim2, lim2)
    b2 = jax.random.uniform(k_b2, (output_dim,), jnp.float32, -lim2, lim2)

    ref_f32 = _ref_forward(timesteps, w1, b1, w2, b2, embedding_dim)

    # 1) f32-parameter path: exact check against the f32 reference.
    params_f32 = prepare_timestep_embedding_params(
        w1, b1, w2, b2, embedding_dim=embedding_dim, param_dtype=jnp.float32)
    out_f32 = timestep_embedding(timesteps, params_f32)
    out_f32 = jax.block_until_ready(out_f32)
    assert out_f32.shape == (B, output_dim), out_f32.shape
    assert jnp.allclose(out_f32, ref_f32, atol=1e-3, rtol=1e-3), \
        float(jnp.max(jnp.abs(out_f32 - ref_f32)))

    # 2) Optimized bf16-matmul path: loose check vs the f32 reference and
    #    tight-ish check vs a bf16-cast reference.
    params_bf16 = prepare_timestep_embedding_params(
        w1, b1, w2, b2, embedding_dim=embedding_dim, param_dtype=jnp.bfloat16)
    out_bf16 = timestep_embedding(timesteps, params_bf16)
    out_bf16 = jax.block_until_ready(out_bf16)
    assert out_bf16.shape == (B, output_dim), out_bf16.shape
    assert jnp.allclose(out_bf16, ref_f32, atol=5e-2, rtol=5e-2), \
        float(jnp.max(jnp.abs(out_bf16 - ref_f32)))
    ref_bf16 = _ref_forward(timesteps, w1, b1, w2, b2, embedding_dim,
                            cast_dtype=jnp.bfloat16)
    assert jnp.allclose(out_bf16, ref_bf16, atol=1e-2, rtol=1e-2), \
        float(jnp.max(jnp.abs(out_bf16 - ref_bf16)))

    # 3) Non-multiple-of-8 batch (exercises minimal-padding tiling and, on
    #    v7x, the >=2-tile grid split), with a small explicit tile override.
    B2 = 20
    timesteps2 = jax.random.uniform(k_t2, (B2,), jnp.float32, 0.0, 1000.0)
    ref2 = _ref_forward(timesteps2, w1, b1, w2, b2, embedding_dim)
    out2 = timestep_embedding(timesteps2, params_f32, block_b=16)
    out2 = jax.block_until_ready(out2)
    assert out2.shape == (B2, output_dim), out2.shape
    assert jnp.allclose(out2, ref2, atol=1e-3, rtol=1e-3), \
        float(jnp.max(jnp.abs(out2 - ref2)))

    print("KERNEL_OK")
</pallas_src>

<mosaic_0001>
module attributes {stable_mosaic.version = 11 : i64} {
  func.func @timestep_embedding_kernel(%arg0: i32, %arg1: memref<8x1xf32, #tpu.memory_space<vmem>>, %arg2: memref<2x128xf32, #tpu.memory_space<vmem>>, %arg3: memref<128x128xf32, #tpu.memory_space<vmem>>, %arg4: memref<1x128xf32, #tpu.memory_space<vmem>>, %arg5: memref<128x128xf32, #tpu.memory_space<vmem>>, %arg6: memref<1x128xf32, #tpu.memory_space<vmem>>, %arg7: memref<8x128xf32, #tpu.memory_space<vmem>>) attributes {dimension_semantics = [#tpu.dimension_semantics<parallel>], iteration_bounds = array<i64: 1>, scalar_prefetch = 0 : i64, scratch_operands = 0 : i64, tpu.core_type = #tpu.core_type<tc>, window_params = [{transform_indices = @transform_0, window_bounds = array<i64: 8, 1>}, {pipeline_mode = #tpu.pipeline_mode<synchronous>, transform_indices = @transform_1, window_bounds = array<i64: 2, 128>}, {pipeline_mode = #tpu.pipeline_mode<synchronous>, transform_indices = @transform_2, window_bounds = array<i64: 128, 128>}, {pipeline_mode = #tpu.pipeline_mode<synchronous>, transform_indices = @transform_3, window_bounds = array<i64: 1, 128>}, {pipeline_mode = #tpu.pipeline_mode<synchronous>, transform_indices = @transform_4, window_bounds = array<i64: 128, 128>}, {pipeline_mode = #tpu.pipeline_mode<synchronous>, transform_indices = @transform_5, window_bounds = array<i64: 1, 128>}, {transform_indices = @transform_6, window_bounds = array<i64: 8, 128>}]} {
    %c0 = arith.constant 0 : index
    %c0_0 = arith.constant 0 : index
    %0 = vector.load %arg1[%c0, %c0_0] : memref<8x1xf32, #tpu.memory_space<vmem>>, vector<8x1xf32>
    %c0_1 = arith.constant 0 : index
    %c0_2 = arith.constant 0 : index
    %1 = vector.load %arg2[%c0_1, %c0_2] : memref<2x128xf32, #tpu.memory_space<vmem>>, vector<1x128xf32>
    %c1 = arith.constant 1 : index
    %c0_3 = arith.constant 0 : index
    %2 = vector.load %arg2[%c1, %c0_3] : memref<2x128xf32, #tpu.memory_space<vmem>>, vector<1x128xf32>
    %3 = vector.broadcast %0 : vector<8x1xf32> to vector<8x128xf32>
    %4 = vector.broadcast %1 : vector<1x128xf32> to vector<8x128xf32>
    %5 = arith.mulf %3, %4 : vector<8x128xf32>
    %6 = vector.broadcast %2 : vector<1x128xf32> to vector<8x128xf32>
    %7 = arith.addf %5, %6 : vector<8x128xf32>
    %8 = math.sin %7 : vector<8x128xf32>
    %c0_4 = arith.constant 0 : index
    %c0_5 = arith.constant 0 : index
    %9 = vector.load %arg3[%c0_4, %c0_5] : memref<128x128xf32, #tpu.memory_space<vmem>>, vector<128x128xf32>
    %cst = arith.constant dense<0.000000e+00> : vector<8x128xf32>
    %10 = tpu.matmul %8, %9, %cst {dimension_numbers = #tpu.dot_dimension_numbers<[1], [0], [0], [1], [0, 0, 1, 1], [], []>} : vector<8x128xf32>, vector<128x128xf32>, vector<8x128xf32> -> vector<8x128xf32>
    %c0_6 = arith.constant 0 : index
    %c0_7 = arith.constant 0 : index
    %11 = vector.load %arg4[%c0_6, %c0_7] : memref<1x128xf32, #tpu.memory_space<vmem>>, vector<1x128xf32>
    %12 = vector.broadcast %11 : vector<1x128xf32> to vector<8x128xf32>
    %13 = arith.addf %10, %12 : vector<8x128xf32>
    %cst_8 = arith.constant 2.000000e-01 : f32
    %14 = vector.broadcast %cst_8 : f32 to vector<8x128xf32>
    %15 = arith.mulf %14, %13 : vector<8x128xf32>
    %16 = arith.maximumf %13, %15 : vector<8x128xf32>
    %c0_9 = arith.constant 0 : index
    %c0_10 = arith.constant 0 : index
    %17 = vector.load %arg5[%c0_9, %c0_10] : memref<128x128xf32, #tpu.memory_space<vmem>>, vector<128x128xf32>
    %cst_11 = arith.constant dense<0.000000e+00> : vector<8x128xf32>
    %18 = tpu.matmul %16, %17, %cst_11 {dimension_numbers = #tpu.dot_dimension_numbers<[1], [0], [0], [1], [0, 0, 1, 1], [], []>} : vector<8x128xf32>, vector<128x128xf32>, vector<8x128xf32> -> vector<8x128xf32>
    %c0_12 = arith.constant 0 : index
    %c0_13 = arith.constant 0 : index
    %19 = vector.load %arg6[%c0_12, %c0_13] : memref<1x128xf32, #tpu.memory_space<vmem>>, vector<1x128xf32>
    %20 = vector.broadcast %19 : vector<1x128xf32> to vector<8x128xf32>
    %21 = arith.addf %18, %20 : vector<8x128xf32>
    %cst_14 = arith.constant 2.000000e-01 : f32
    %22 = vector.broadcast %cst_14 : f32 to vector<8x128xf32>
    %23 = arith.mulf %22, %21 : vector<8x128xf32>
    %24 = arith.maximumf %21, %23 : vector<8x128xf32>
    %c0_15 = arith.constant 0 : index
    %c0_16 = arith.constant 0 : index
    %25 = vector.load %arg7[%c0_15, %c0_16] : memref<8x128xf32, #tpu.memory_space<vmem>>, vector<8x128xf32>
    tpu.vector_store %arg7[%c0_15, %c0_16], %24 {strides = array<i32>} : memref<8x128xf32, #tpu.memory_space<vmem>>, vector<8x128xf32>,
    return
  }
  func.func @transform_0(%arg0: i32) -> (i32, i32) {
    %c0_i32 = arith.constant 0 : i32
    %c0_i32_0 = arith.constant 0 : i32
    return %arg0, %c0_i32 : i32, i32
  }
  func.func @transform_1(%arg0: i32) -> (i32, i32) {
    %c0_i32 = arith.constant 0 : i32
    %c0_i32_0 = arith.constant 0 : i32
    %c0_i32_1 = arith.constant 0 : i32
    return %c0_i32, %c0_i32_0 : i32, i32
  }
  func.func @transform_2(%arg0: i32) -> (i32, i32) {
    %c0_i32 = arith.constant 0 : i32
    %c0_i32_0 = arith.constant 0 : i32
    %c0_i32_1 = arith.constant 0 : i32
    return %c0_i32, %c0_i32_0 : i32, i32
  }
  func.func @transform_3(%arg0: i32) -> (i32, i32) {
    %c0_i32 = arith.constant 0 : i32
    %c0_i32_0 = arith.constant 0 : i32
    %c0_i32_1 = arith.constant 0 : i32
    return %c0_i32, %c0_i32_0 : i32, i32
  }
  func.func @transform_4(%arg0: i32) -> (i32, i32) {
    %c0_i32 = arith.constant 0 : i32
    %c0_i32_0 = arith.constant 0 : i32
    %c0_i32_1 = arith.constant 0 : i32
    return %c0_i32, %c0_i32_0 : i32, i32
  }
  func.func @transform_5(%arg0: i32) -> (i32, i32) {
    %c0_i32 = arith.constant 0 : i32
    %c0_i32_0 = arith.constant 0 : i32
    %c0_i32_1 = arith.constant 0 : i32
    return %c0_i32, %c0_i32_0 : i32, i32
  }
  func.func @transform_6(%arg0: i32) -> (i32, i32) {
    %c0_i32 = arith.constant 0 : i32
    %c0_i32_0 = arith.constant 0 : i32
    return %arg0, %c0_i32 : i32, i32
  }
}

module attributes {stable_mosaic.version = 11 : i64} {
  func.func @timestep_embedding_kernel(%arg0: i32, %arg1: memref<8x1xf32, #tpu.memory_space<vmem>>, %arg2: memref<2x128xf32, #tpu.memory_space<vmem>>, %arg3: memref<128x128xf32, #tpu.memory_space<vmem>>, %arg4: memref<1x128xf32, #tpu.memory_space<vmem>>, %arg5: memref<128x128xf32, #tpu.memory_space<vmem>>, %arg6: memref<1x128xf32, #tpu.memory_space<vmem>>, %arg7: memref<8x128xf32, #tpu.memory_space<vmem>>) attributes {dimension_semantics = [#tpu.dimension_semantics<parallel>], iteration_bounds = array<i64: 1>, scalar_prefetch = 0 : i64, scratch_operands = 0 : i64, tpu.core_type = #tpu.core_type<tc>, window_params = [{transform_indices = @transform_0, window_bounds = array<i64: 8, 1>}, {pipeline_mode = #tpu.pipeline_mode<synchronous>, transform_indices = @transform_1, window_bounds = array<i64: 2, 128>}, {pipeline_mode = #tpu.pipeline_mode<synchronous>, transform_indices = @transform_2, window_bounds = array<i64: 128, 128>}, {pipeline_mode = #tpu.pipeline_mode<synchronous>, transform_indices = @transform_3, window_bounds = array<i64: 1, 128>}, {pipeline_mode = #tpu.pipeline_mode<synchronous>, transform_indices = @transform_4, window_bounds = array<i64: 128, 128>}, {pipeline_mode = #tpu.pipeline_mode<synchronous>, transform_indices = @transform_5, window_bounds = array<i64: 1, 128>}, {transform_indices = @transform_6, window_bounds = array<i64: 8, 128>}]} {
    %c0 = arith.constant 0 : index
    %c0_0 = arith.constant 0 : index
    %0 = vector.load %arg1[%c0, %c0_0] : memref<8x1xf32, #tpu.memory_space<vmem>>, vector<8x1xf32>
    %c0_1 = arith.constant 0 : index
    %c0_2 = arith.constant 0 : index
    %1 = vector.load %arg2[%c0_1, %c0_2] : memref<2x128xf32, #tpu.memory_space<vmem>>, vector<1x128xf32>
    %c1 = arith.constant 1 : index
    %c0_3 = arith.constant 0 : index
    %2 = vector.load %arg2[%c1, %c0_3] : memref<2x128xf32, #tpu.memory_space<vmem>>, vector<1x128xf32>
    %3 = vector.broadcast %0 : vector<8x1xf32> to vector<8x128xf32>
    %4 = vector.broadcast %1 : vector<1x128xf32> to vector<8x128xf32>
    %5 = arith.mulf %3, %4 : vector<8x128xf32>
    %6 = vector.broadcast %2 : vector<1x128xf32> to vector<8x128xf32>
    %7 = arith.addf %5, %6 : vector<8x128xf32>
    %8 = math.sin %7 : vector<8x128xf32>
    %c0_4 = arith.constant 0 : index
    %c0_5 = arith.constant 0 : index
    %9 = vector.load %arg3[%c0_4, %c0_5] : memref<128x128xf32, #tpu.memory_space<vmem>>, vector<128x128xf32>
    %cst = arith.constant dense<0.000000e+00> : vector<8x128xf32>
    %10 = tpu.matmul %8, %9, %cst {dimension_numbers = #tpu.dot_dimension_numbers<[1], [0], [0], [1], [0, 0, 1, 1], [], []>} : vector<8x128xf32>, vector<128x128xf32>, vector<8x128xf32> -> vector<8x128xf32>
    %c0_6 = arith.constant 0 : index
    %c0_7 = arith.constant 0 : index
    %11 = vector.load %arg4[%c0_6, %c0_7] : memref<1x128xf32, #tpu.memory_space<vmem>>, vector<1x128xf32>
    %12 = vector.broadcast %11 : vector<1x128xf32> to vector<8x128xf32>
    %13 = arith.addf %10, %12 : vector<8x128xf32>
    %cst_8 = arith.constant 2.000000e-01 : f32
    %14 = vector.broadcast %cst_8 : f32 to vector<8x128xf32>
    %15 = arith.mulf %14, %13 : vector<8x128xf32>
    %16 = arith.maximumf %13, %15 : vector<8x128xf32>
    %c0_9 = arith.constant 0 : index
    %c0_10 = arith.constant 0 : index
    %17 = vector.load %arg5[%c0_9, %c0_10] : memref<128x128xf32, #tpu.memory_space<vmem>>, vector<128x128xf32>
    %cst_11 = arith.constant dense<0.000000e+00> : vector<8x128xf32>
    %18 = tpu.matmul %16, %17, %cst_11 {dimension_numbers = #tpu.dot_dimension_numbers<[1], [0], [0], [1], [0, 0, 1, 1], [], []>} : vector<8x128xf32>, vector<128x128xf32>, vector<8x128xf32> -> vector<8x128xf32>
    %c0_12 = arith.constant 0 : index
    %c0_13 = arith.constant 0 : index
    %19 = vector.load %arg6[%c0_12, %c0_13] : memref<1x128xf32, #tpu.memory_space<vmem>>, vector<1x128xf32>
    %20 = vector.broadcast %19 : vector<1x128xf32> to vector<8x128xf32>
    %21 = arith.addf %18, %20 : vector<8x128xf32>
    %cst_14 = arith.constant 2.000000e-01 : f32
    %22 = vector.broadcast %cst_14 : f32 to vector<8x128xf32>
    %23 = arith.mulf %22, %21 : vector<8x128xf32>
    %24 = arith.maximumf %21, %23 : vector<8x128xf32>
    %c0_15 = arith.constant 0 : index
    %c0_16 = arith.constant 0 : index
    %25 = vector.load %arg7[%c0_15, %c0_16] : memref<8x128xf32, #tpu.memory_space<vmem>>, vector<8x128xf32>
    tpu.vector_store %arg7[%c0_15, %c0_16], %24 {strides = array<i32>} : memref<8x128xf32, #tpu.memory_space<vmem>>, vector<8x128xf32>,
    return
  }
  func.func @transform_0(%arg0: i32) -> (i32, i32) {
    %c0_i32 = arith.constant 0 : i32
    %c0_i32_0 = arith.constant 0 : i32
    return %arg0, %c0_i32 : i32, i32
  }
  func.func @transform_1(%arg0: i32) -> (i32, i32) {
    %c0_i32 = arith.constant 0 : i32
    %c0_i32_0 = arith.constant 0 : i32
    %c0_i32_1 = arith.constant 0 : i32
    return %c0_i32, %c0_i32_0 : i32, i32
  }
  func.func @transform_2(%arg0: i32) -> (i32, i32) {
    %c0_i32 = arith.constant 0 : i32
    %c0_i32_0 = arith.constant 0 : i32
    %c0_i32_1 = arith.constant 0 : i32
    return %c0_i32, %c0_i32_0 : i32, i32
  }
  func.func @transform_3(%arg0: i32) -> (i32, i32) {
    %c0_i32 = arith.constant 0 : i32
    %c0_i32_0 = arith.constant 0 : i32
    %c0_i32_1 = arith.constant 0 : i32
    return %c0_i32, %c0_i32_0 : i32, i32
  }
  func.func @transform_4(%arg0: i32) -> (i32, i32) {
    %c0_i32 = arith.constant 0 : i32
    %c0_i32_0 = arith.constant 0 : i32
    %c0_i32_1 = arith.constant 0 : i32
    return %c0_i32, %c0_i32_0 : i32, i32
  }
  func.func @transform_5(%arg0: i32) -> (i32, i32) {
    %c0_i32 = arith.constant 0 : i32
    %c0_i32_0 = arith.constant 0 : i32
    %c0_i32_1 = arith.constant 0 : i32
    return %c0_i32, %c0_i32_0 : i32, i32
  }
  func.func @transform_6(%arg0: i32) -> (i32, i32) {
    %c0_i32 = arith.constant 0 : i32
    %c0_i32_0 = arith.constant 0 : i32
    return %arg0, %c0_i32 : i32, i32
  }
}

</mosaic_0001>

<llo_original>
// kernel: tpu_custom_call.1
$region0: #{tpu_custom_call.1}
  #allocation0 [shape = 'u32[]', space=smem, size = 0x4, offset = 0x4, fixed_abs, tag = 'smem constant byte address 0x4 - core index']
  #allocation1 [shape = 'u32[72,128]{1,0:T(1,128)}', space=vmem, size = 0x9000, scoped, tag = 'internal scratch']
  %s0 = inlined_call_operand.vmem [shape: f32[8,1], index: 0, kind: input, shape index: {}]
  %s1 = inlined_call_operand.vmem [shape: f32[2,128], index: 1, kind: input, shape index: {}]
  %s2 = inlined_call_operand.hbm [shape: f32[128,128], index: 2, kind: input, shape index: {}]
  %s3 = inlined_call_operand.vmem [shape: f32[1,128], index: 3, kind: input, shape index: {}]
  %s4 = inlined_call_operand.hbm [shape: f32[128,128], index: 4, kind: input, shape index: {}]
  %s5 = inlined_call_operand.vmem [shape: f32[1,128], index: 5, kind: input, shape index: {}]
  %s6 = inlined_call_operand.hbm [shape: f32[8,128], index: 6, kind: output, shape index: {}]
  %s7 = sld [smem:[#allocation0]]
  $region42: #{tpu_custom_call.1} parent=0
    _
  %s9 = ssub.s32 1, %s7
  %s10 = scalar_select 0, %s9, %s7
  $region1: #{tpu_custom_call.1} parent=0
    #allocation2 [shape = 'u8[65536]{0}', space=vmem, size = 0x10000, scoped, tag = 'input window, operand 2, single buffered']
    #allocation3 [shape = 's32[1]{0}', space=sflag, size = 0x4, scoped, tag = 'scoped memory for tpu_custom_call.1']
    #allocation4 [shape = 's32[1]{0}', space=sflag, size = 0x4, scoped, tag = 'scoped memory for tpu_custom_call.1']
    #allocation5 [shape = 'u8[65536]{0}', space=vmem, size = 0x10000, scoped, tag = 'input window, operand 4, single buffered']
    #allocation6 [shape = 's32[1]{0}', space=sflag, size = 0x4, scoped, tag = 'scoped memory for tpu_custom_call.1']
    #allocation7 [shape = 'u8[4096]{0}', space=vmem, size = 0x1000, scoped, tag = 'output window, operand 0, single buffered']
    %11 = vsyncpa [#allocation3], 0
    %12 = vsyncpa [#allocation6], 0
    %13 = vsyncpa [#allocation4], 0
    // Predicated region
    $region2: #{tpu_custom_call.1} parent=1 // pred_check
      _
    $region3: #{tpu_custom_call.1} parent=1 // pred_check_branch
      %15 = sbr.rel (0) target = $region5
    $region4: #{tpu_custom_call.1} parent=1 // pred_region
      _
    $region5: #{tpu_custom_call.1} parent=1 // pred_fallthru
      _
    // Predicated region
    $region6: #{tpu_custom_call.1} parent=1 // pred_check
      _
    $region7: #{tpu_custom_call.1} parent=1 // pred_check_branch
      %17 = sbr.rel (0) target = $region9
    $region8: #{tpu_custom_call.1} parent=1 // pred_region
      _
    $region9: #{tpu_custom_call.1} parent=1 // pred_fallthru
      _
    // Predicated region
    $region10: #{tpu_custom_call.1} parent=1 // pred_check
      _
    $region11: #{tpu_custom_call.1} parent=1 // pred_check_branch
      %19 = sbr.rel (0) target = $region13
    $region12: #{tpu_custom_call.1} parent=1 // pred_region
      %21 = vsyncadd [#allocation3], 0
      %s22 = sshll.u32 %s2, 4
      %s23 = int_to_ptr.hbm [resolvable:$true] %s22
      %s24 = sshll.u32 [#allocation2], 4
      %s25 = int_to_ptr.vmem [resolvable:$true] %s24
      %30 = dma.hbm_to_vmem [thread:$0]  %s23, 2048, %s25, [#allocation3], 128, 128, 8
    $region13: #{tpu_custom_call.1} parent=1 // pred_fallthru
      _
    // Predicated region
    $region14: #{tpu_custom_call.1} parent=1 // pred_check
      _
    $region15: #{tpu_custom_call.1} parent=1 // pred_check_branch
      %32 = sbr.rel (0) target = $region17
    $region16: #{tpu_custom_call.1} parent=1 // pred_region
      _
    $region17: #{tpu_custom_call.1} parent=1 // pred_fallthru
      _
    // Predicated region
    $region18: #{tpu_custom_call.1} parent=1 // pred_check
      _
    $region19: #{tpu_custom_call.1} parent=1 // pred_check_branch
      %34 = sbr.rel (0) target = $region21
    $region20: #{tpu_custom_call.1} parent=1 // pred_region
      %36 = vsyncadd [#allocation6], 0
      %s37 = sshll.u32 %s4, 4
      %s38 = int_to_ptr.hbm [resolvable:$true] %s37
      %s39 = sshll.u32 [#allocation5], 4
      %s40 = int_to_ptr.vmem [resolvable:$true] %s39
      %45 = dma.hbm_to_vmem [thread:$0]  %s38, 2048, %s40, [#allocation6], 128, 128, 8
    $region21: #{tpu_custom_call.1} parent=1 // pred_fallthru
      _
    // Predicated region
    $region22: #{tpu_custom_call.1} parent=1 // pred_check
      _
    $region23: #{tpu_custom_call.1} parent=1 // pred_check_branch
      %47 = sbr.rel (0) target = $region25
    $region24: #{tpu_custom_call.1} parent=1 // pred_region
      _
    $region25: #{tpu_custom_call.1} parent=1 // pred_fallthru
      _
    // Predicated region
    $region26: #{tpu_custom_call.1} parent=1 // pred_check
      _
    $region27: #{tpu_custom_call.1} parent=1 // pred_check_branch
      %49 = sbr.rel (0) target = $region29
    $region28: #{tpu_custom_call.1} parent=1 // pred_region
      %51 = dma.done [#allocation3], 2048
    $region29: #{tpu_custom_call.1} parent=1 // pred_fallthru
      _
    // Predicated region
    $region30: #{tpu_custom_call.1} parent=1 // pred_check
      _
    $region31: #{tpu_custom_call.1} parent=1 // pred_check_branch
      %53 = sbr.rel (0) target = $region33
    $region32: #{tpu_custom_call.1} parent=1 // pred_region
      %55 = dma.done [#allocation6], 2048
    $region33: #{tpu_custom_call.1} parent=1 // pred_fallthru
      _
    %v56 = vld [vmem:[%s0] sm:$0xff]
    %v57 = vld [vmem:[%s1] sm:$0x1]
    %v58 = vld [vmem:[%s1 + $0x1] sm:$0x1]
    %60 = vset.pattern.permute.xlu0 0
    %61 = vperm.xlu0 %60, %v56
    %v62 = vpop.permute.xlu0 %61
    %v64 = vperm.slane %v57, 0
    %v65 = vmul.f32 %v62, %v64
    %v66 = vperm.slane %v58, 0
    %v67 = vadd.f32 %v65, %v66
    %v68 = vand.u32 2147483647, %v67
    %vm69 = vcmp.le.f32.partialorder %v68, 0.7853982
    %vm70 = vcmp.lt.s32.totalorder %v67, 0
    %v71 = vand.u32 %v67, 2139095040
    %v72 = vshrl.u32 %v71, 23
    %v73 = vsub.s32 %v72, 127
    %v74 = vand.u32 2147483647, %v67
    %v75 = vand.u32 %v74, 8388607
    %v76 = vor.u32 %v75, 8388608
    %v77 = vsub.s32 0, %v76
    %v78 = vadd.s32 %v73, 1
    %vm79 = vcmp.gt.s32.totalorder %v78, 0
    %v80 = vsel %vm79, %v78, 0
    %v81 = vshrl.u32 %v80, 5
    %v82 = vand.u32 %v80, 31
    %v83 = vsub.s32 32, %v82
    %v84 = vshrl.u32 683565275, %v83
    %v85 = vshll.u32 683565275, %v82
    %v86 = vshrl.u32 2475754826, %v83
    %v87 = vor.u32 %v85, %v86
    %v88 = vshll.u32 2475754826, %v82
    %v89 = vshrl.u32 2131351028, %v83
    %v90 = vor.u32 %v88, %v89
    %v91 = vshll.u32 2131351028, %v82
    %v92 = vshrl.u32 2102212464, %v83
    %v93 = vor.u32 %v91, %v92
    %v94 = vshll.u32 2102212464, %v82
    %v95 = vshrl.u32 920167782, %v83
    %v96 = vor.u32 %v94, %v95
    %v97 = vshll.u32 920167782, %v82
    %v98 = vshrl.u32 1326507024, %v83
    %v99 = vor.u32 %v97, %v98
    %vm100 = vcmp.lt.s32.totalorder %v81, 1
    %vm101 = vcmp.lt.s32.totalorder %v81, 2
    %vm102 = vcmp.lt.s32.totalorder %v81, 3
    %vm103 = vcmp.lt.s32.totalorder %v81, 4
    %v104 = vsel %vm100, %v84, %v87
    %v105 = vsel %vm103, %v93, 2102212464
    %v106 = vsel %vm102, %v90, %v105
    %v107 = vsel %vm101, %v104, %v106
    %v108 = vsel %vm100, %v87, %v90
    %v109 = vsel %vm103, %v96, 920167782
    %v110 = vsel %vm102, %v93, %v109
    %v111 = vsel %vm101, %v108, %v110
    %v112 = vsel %vm100, %v90, %v93
    %v113 = vsel %vm103, %v99, 1326507024
    %v114 = vsel %vm102, %v96, %v113
    %v115 = vsel %vm101, %v112, %v114
    %v116 = vshll.u32 %v76, 8
    %v117 = vand.u32 %v116, 65535
    %v118 = vshrl.u32 %v116, 16
    %v119 = vand.u32 %v115, 65535
    %v120 = vshrl.u32 %v115, 16
    %v121 = vmul.u32 %v117, %v119
    %v122 = vmul.u32 %v117, %v120
    %v123 = vmul.u32 %v118, %v119
    %v124 = vmul.u32 %v118, %v120
    %v125 = vshll.u32 %v122, 16
    %v126 = vshrl.u32 %v122, 16
    %v127 = vshll.u32 %v123, 16
    %v128 = vshrl.u32 %v123, 16
    %vm129 = vc.u32 %v121, %v125
    %v130 = vsel %vm129, 1, 0
    %v131 = vadd.s32 %v121, %v125
    %v132 = vadd.s32 %v124, %v130
    %vm133 = vc.u32 %v131, %v127
    %v134 = vsel %vm133, 1, 0
    %v135 = vadd.s32 %v131, %v127
    %v136 = vadd.s32 %v132, %v134
    %v137 = vadd.s32 %v136, %v126
    %v138 = vadd.s32 %v137, %v128
    %v139 = vand.u32 %v116, 65535
    %v140 = vshrl.u32 %v116, 16
    %v141 = vand.u32 %v111, 65535
    %v142 = vshrl.u32 %v111, 16
    %v143 = vmul.u32 %v139, %v141
    %v144 = vmul.u32 %v139, %v142
    %v145 = vmul.u32 %v140, %v141
    %v146 = vmul.u32 %v140, %v142
    %v147 = vshll.u32 %v144, 16
    %v148 = vshrl.u32 %v144, 16
    %v149 = vshll.u32 %v145, 16
    %v150 = vshrl.u32 %v145, 16
    %vm151 = vc.u32 %v143, %v147
    %v152 = vsel %vm151, 1, 0
    %v153 = vadd.s32 %v143, %v147
    %v154 = vadd.s32 %v146, %v152
    %vm155 = vc.u32 %v153, %v149
    %v156 = vsel %vm155, 1, 0
    %v157 = vadd.s32 %v153, %v149
    %v158 = vadd.s32 %v154, %v156
    %v159 = vadd.s32 %v158, %v148
    %v160 = vadd.s32 %v159, %v150
    %v161 = vmul.u32 %v116, %v107
    %v162 = vadd.s32 %v138, %v157
    %vm163 = vc.u32 %v138, %v157
    %v164 = vadd.s32 %v160, 1
    %v165 = vsel %vm163, %v164, %v160
    %v166 = vadd.s32 %v161, %v165
    %v167 = vadd.s32 %v166, 536870912
    %v168 = vshrl.u32 %v167, 30
    %v169 = vshll.u32 %v168, 30
    %v170 = vsub.s32 %v166, %v169
    %vm171 = vcmp.lt.s32.totalorder %v170, 0
    %v172 = vsub.s32 0, %v170
    %v173 = vsel %vm171, %v172, %v170
    %v174 = vclz %v173
    %v175 = vsub.s32 %v174, 2
    %vm176 = vcmp.gt.s32.totalorder 0, %v175
    %v177 = vsel %vm176, 0, %v175
    %v178 = vsub.s32 32, %v177
    %v179 = vshll.u32 %v170, %v177
    %v180 = vshrl.u32 %v162, %v178
    %v181 = vor.u32 %v179, %v180
    %v182 = vsub.s32 4294967266, %v177
    %v183 = vadd.s32 %v182, 127
    %v184 = vshll.u32 %v183, 23
    %v185 = vor.u32 4788187, %v184
    %v186 = vand.u32 2147483647, %v185
    %v188 = vcvt.s32.f32 %v181
    %v189 = vmul.f32 %v188, %v186
    %v190 = vxor.u32 %v189, 2147483648
    %v191 = vsel %vm70, %v190, %v189
    %v192 = vsub.s32 4, %v168
    %v193 = vsel %vm70, %v192, %v168
    %v194 = vsel %vm69, %v67, %v191
    %v195 = vsel %vm69, 0, %v193
    %v196 = vmul.f32 %v194, %v194
    %v197 = vmul.f32 %v196, -0.001358992
    %v198 = vadd.f32 %v197, 0.041655596
    %v199 = vmul.f32 %v196, %v198
    %v200 = vadd.f32 %v199, -0.4999988
    %v201 = vmul.f32 %v196, %v200
    %v202 = vadd.f32 1.0, %v201
    %v203 = vmul.f32 %v194, %v194
    %v204 = vmul.f32 %v203, -0.00019511016
    %v205 = vadd.f32 %v204, 0.008332121
    %v206 = vmul.f32 %v203, %v205
    %v207 = vadd.f32 %v206, -0.16666654
    %v208 = vmul.f32 %v203, %v207
    %v209 = vadd.f32 %v208, 1.0
    %v210 = vmul.f32 %v209, %v194
    %vm211 = vweird.f32 %v67
    %v212 = vadd.s32 %v195, 3
    %v213 = vand.u32 %v212, 3
    %vm214 = vcmp.lt.s32.totalorder %v213, 2
    %vm215 = vcmp.eq.s32.totalorder %v213, 0
    %v216 = vxor.u32 %v210, 2147483648
    %v217 = vsel %vm215, %v202, %v216
    %vm218 = vcmp.eq.s32.totalorder %v213, 2
    %v219 = vxor.u32 %v202, 2147483648
    %v220 = vsel %vm218, %v219, %v210
    %v221 = vsel %vm214, %v217, %v220
    %v222 = vsel %vm211, nan, %v221
    %v223 = vld [vmem:[#allocation2] sm:$0xff]
    %v224 = vld [vmem:[#allocation2 + $0x8] sm:$0xff]
    %v225 = vld [vmem:[#allocation2 + $0x10] sm:$0xff]
    %v226 = vld [vmem:[#allocation2 + $0x18] sm:$0xff]
    %v227 = vld [vmem:[#allocation2 + $0x20] sm:$0xff]
    %v228 = vld [vmem:[#allocation2 + $0x28] sm:$0xff]
    %v229 = vld [vmem:[#allocation2 + $0x30] sm:$0xff]
    %v230 = vld [vmem:[#allocation2 + $0x38] sm:$0xff]
    %v231 = vld [vmem:[#allocation2 + $0x40] sm:$0xff]
    %v232 = vld [vmem:[#allocation2 + $0x48] sm:$0xff]
    %v233 = vld [vmem:[#allocation2 + $0x50] sm:$0xff]
    %v234 = vld [vmem:[#allocation2 + $0x58] sm:$0xff]
    %v235 = vld [vmem:[#allocation2 + $0x60] sm:$0xff]
    %v236 = vld [vmem:[#allocation2 + $0x68] sm:$0xff]
    %v237 = vld [vmem:[#allocation2 + $0x70] sm:$0xff]
    %v238 = vld [vmem:[#allocation2 + $0x78] sm:$0xff]
    %v239 = vld [vmem:[%s3] sm:$0x1]
    %v241 = vperm.slane %v239, 0
    %243 = vmatpush.msra.mxu0 %v238
    %244 = vmatpush.msra.mxu0 %v237
    %245 = vmatpush.msra.mxu0 %v236
    %246 = vmatpush.msra.mxu0 %v235
    %247 = vmatpush.msra.mxu0 %v234
    %248 = vmatpush.msra.mxu0 %v233
    %249 = vmatpush.msra.mxu0 %v232
    %250 = vmatpush.msra.mxu0 %v231
    %251 = vmatpush.msra.mxu0 %v230
    %252 = vmatpush.msra.mxu0 %v229
    %253 = vmatpush.msra.mxu0 %v228
    %254 = vmatpush.msra.mxu0 %v227
    %255 = vmatpush.msra.mxu0 %v226
    %256 = vmatpush.msra.mxu0 %v225
    %257 = vmatpush.msra.mxu0 %v224
    %258 = vmatpush.msra.mxu0 %v223
    %259 = vmatmul.f32.gmra.mxu0 %v222
    %v260 = vpop.f32.mrf.mxu0
    %v261 = vadd.f32 %v241, %v260
    %262 = vdwg.mxu0
    %v263 = vmul.f32 %v261, 0.2
    %v264 = vmax.f32 %v261, %v263
    %v265 = vld [vmem:[#allocation5] sm:$0xff]
    %v266 = vld [vmem:[#allocation5 + $0x8] sm:$0xff]
    %v267 = vld [vmem:[#allocation5 + $0x10] sm:$0xff]
    %v268 = vld [vmem:[#allocation5 + $0x18] sm:$0xff]
    %v269 = vld [vmem:[#allocation5 + $0x20] sm:$0xff]
    %v270 = vld [vmem:[#allocation5 + $0x28] sm:$0xff]
    %v271 = vld [vmem:[#allocation5 + $0x30] sm:$0xff]
    %v272 = vld [vmem:[#allocation5 + $0x38] sm:$0xff]
    %v273 = vld [vmem:[#allocation5 + $0x40] sm:$0xff]
    %v274 = vld [vmem:[#allocation5 + $0x48] sm:$0xff]
    %v275 = vld [vmem:[#allocation5 + $0x50] sm:$0xff]
    %v276 = vld [vmem:[#allocation5 + $0x58] sm:$0xff]
    %v277 = vld [vmem:[#allocation5 + $0x60] sm:$0xff]
    %v278 = vld [vmem:[#allocation5 + $0x68] sm:$0xff]
    %v279 = vld [vmem:[#allocation5 + $0x70] sm:$0xff]
    %v280 = vld [vmem:[#allocation5 + $0x78] sm:$0xff]
    %v281 = vld [vmem:[%s5] sm:$0x1]
    %v283 = vperm.slane %v281, 0
    %285 = vmatpush.msra.mxu0 %v280
    %286 = vmatpush.msra.mxu0 %v279
    %287 = vmatpush.msra.mxu0 %v278
    %288 = vmatpush.msra.mxu0 %v277
    %289 = vmatpush.msra.mxu0 %v276
    %290 = vmatpush.msra.mxu0 %v275
    %291 = vmatpush.msra.mxu0 %v274
    %292 = vmatpush.msra.mxu0 %v273
    %293 = vmatpush.msra.mxu0 %v272
    %294 = vmatpush.msra.mxu0 %v271
    %295 = vmatpush.msra.mxu0 %v270
    %296 = vmatpush.msra.mxu0 %v269
    %297 = vmatpush.msra.mxu0 %v268
    %298 = vmatpush.msra.mxu0 %v267
    %299 = vmatpush.msra.mxu0 %v266
    %300 = vmatpush.msra.mxu0 %v265
    %301 = vmatmul.f32.gmra.mxu0 %v264
    %v302 = vpop.f32.mrf.mxu0
    %v303 = vadd.f32 %v283, %v302
    %304 = vdwg.mxu0
    %v305 = vmul.f32 %v303, 0.2
    %v306 = vmax.f32 %v303, %v305
    %307 = vst [vmem:[#allocation7] sm:$0xff] %v306
    // Predicated region
    $region34: #{tpu_custom_call.1} parent=1 // pred_check
      _
    $region35: #{tpu_custom_call.1} parent=1 // pred_check_branch
      %309 = sbr.rel (0) target = $region37
    $region36: #{tpu_custom_call.1} parent=1 // pred_region
      %311 = vsyncadd [#allocation4], 0
      %s313 = sshll.u32 [#allocation7], 4
      %s314 = int_to_ptr.vmem [resolvable:$true] %s313
      %s315 = sshll.u32 %s6, 4
      %s316 = int_to_ptr.hbm [resolvable:$true] %s315
      %318 = dma.vmem_to_hbm [thread:$0]  %s314, 128, %s316, [#allocation4]
    $region37: #{tpu_custom_call.1} parent=1 // pred_fallthru
      _
    // Predicated region
    $region38: #{tpu_custom_call.1} parent=1 // pred_check
      _
    $region39: #{tpu_custom_call.1} parent=1 // pred_check_branch
      %320 = sbr.rel (0) target = $region41
    $region40: #{tpu_custom_call.1} parent=1 // pred_region
      %322 = dma.done [#allocation4], 128
    $region41: #{tpu_custom_call.1} parent=1 // pred_fallthru
      _
    %323 = vsyncpa [#allocation3], 1
    %324 = vsyncpa [#allocation6], 1
    %325 = vsyncpa [#allocation4], 1

// kernel: tpu_custom_call.1
$region0: #{tpu_custom_call.1}
  #allocation0 [shape = 'u32[]', space=smem, size = 0x4, offset = 0x4, fixed_abs, tag = 'smem constant byte address 0x4 - core index']
  #allocation1 [shape = 'u32[72,128]{1,0:T(1,128)}', space=vmem, size = 0x9000, scoped, tag = 'internal scratch']
  %s0 = inlined_call_operand.vmem [shape: f32[8,1], index: 0, kind: input, shape index: {}]
  %s1 = inlined_call_operand.vmem [shape: f32[2,128], index: 1, kind: input, shape index: {}]
  %s2 = inlined_call_operand.hbm [shape: f32[128,128], index: 2, kind: input, shape index: {}]
  %s3 = inlined_call_operand.vmem [shape: f32[1,128], index: 3, kind: input, shape index: {}]
  %s4 = inlined_call_operand.hbm [shape: f32[128,128], index: 4, kind: input, shape index: {}]
  %s5 = inlined_call_operand.vmem [shape: f32[1,128], index: 5, kind: input, shape index: {}]
  %s6 = inlined_call_operand.hbm [shape: f32[8,128], index: 6, kind: output, shape index: {}]
  %s7 = sld [smem:[#allocation0]]
  $region42: #{tpu_custom_call.1} parent=0
    _
  %s9 = ssub.s32 1, %s7
  %s10 = scalar_select 0, %s9, %s7
  $region1: #{tpu_custom_call.1} parent=0
    #allocation2 [shape = 'u8[65536]{0}', space=vmem, size = 0x10000, scoped, tag = 'input window, operand 2, single buffered']
    #allocation3 [shape = 's32[1]{0}', space=sflag, size = 0x4, scoped, tag = 'scoped memory for tpu_custom_call.1']
    #allocation4 [shape = 's32[1]{0}', space=sflag, size = 0x4, scoped, tag = 'scoped memory for tpu_custom_call.1']
    #allocation5 [shape = 'u8[65536]{0}', space=vmem, size = 0x10000, scoped, tag = 'input window, operand 4, single buffered']
    #allocation6 [shape = 's32[1]{0}', space=sflag, size = 0x4, scoped, tag = 'scoped memory for tpu_custom_call.1']
    #allocation7 [shape = 'u8[4096]{0}', space=vmem, size = 0x1000, scoped, tag = 'output window, operand 0, single buffered']
    %11 = vsyncpa [#allocation3], 0
    %12 = vsyncpa [#allocation6], 0
    %13 = vsyncpa [#allocation4], 0
    // Predicated region
    $region2: #{tpu_custom_call.1} parent=1 // pred_check
      _
    $region3: #{tpu_custom_call.1} parent=1 // pred_check_branch
      %15 = sbr.rel (0) target = $region5
    $region4: #{tpu_custom_call.1} parent=1 // pred_region
      _
    $region5: #{tpu_custom_call.1} parent=1 // pred_fallthru
      _
    // Predicated region
    $region6: #{tpu_custom_call.1} parent=1 // pred_check
      _
    $region7: #{tpu_custom_call.1} parent=1 // pred_check_branch
      %17 = sbr.rel (0) target = $region9
    $region8: #{tpu_custom_call.1} parent=1 // pred_region
      _
    $region9: #{tpu_custom_call.1} parent=1 // pred_fallthru
      _
    // Predicated region
    $region10: #{tpu_custom_call.1} parent=1 // pred_check
      _
    $region11: #{tpu_custom_call.1} parent=1 // pred_check_branch
      %19 = sbr.rel (0) target = $region13
    $region12: #{tpu_custom_call.1} parent=1 // pred_region
      %21 = vsyncadd [#allocation3], 0
      %s22 = sshll.u32 %s2, 4
      %s23 = int_to_ptr.hbm [resolvable:$true] %s22
      %s24 = sshll.u32 [#allocation2], 4
      %s25 = int_to_ptr.vmem [resolvable:$true] %s24
      %30 = dma.hbm_to_vmem [thread:$0]  %s23, 2048, %s25, [#allocation3], 128, 128, 8
    $region13: #{tpu_custom_call.1} parent=1 // pred_fallthru
      _
    // Predicated region
    $region14: #{tpu_custom_call.1} parent=1 // pred_check
      _
    $region15: #{tpu_custom_call.1} parent=1 // pred_check_branch
      %32 = sbr.rel (0) target = $region17
    $region16: #{tpu_custom_call.1} parent=1 // pred_region
      _
    $region17: #{tpu_custom_call.1} parent=1 // pred_fallthru
      _
    // Predicated region
    $region18: #{tpu_custom_call.1} parent=1 // pred_check
      _
    $region19: #{tpu_custom_call.1} parent=1 // pred_check_branch
      %34 = sbr.rel (0) target = $region21
    $region20: #{tpu_custom_call.1} parent=1 // pred_region
      %36 = vsyncadd [#allocation6], 0
      %s37 = sshll.u32 %s4, 4
      %s38 = int_to_ptr.hbm [resolvable:$true] %s37
      %s39 = sshll.u32 [#allocation5], 4
      %s40 = int_to_ptr.vmem [resolvable:$true] %s39
      %45 = dma.hbm_to_vmem [thread:$0]  %s38, 2048, %s40, [#allocation6], 128, 128, 8
    $region21: #{tpu_custom_call.1} parent=1 // pred_fallthru
      _
    // Predicated region
    $region22: #{tpu_custom_call.1} parent=1 // pred_check
      _
    $region23: #{tpu_custom_call.1} parent=1 // pred_check_branch
      %47 = sbr.rel (0) target = $region25
    $region24: #{tpu_custom_call.1} parent=1 // pred_region
      _
    $region25: #{tpu_custom_call.1} parent=1 // pred_fallthru
      _
    // Predicated region
    $region26: #{tpu_custom_call.1} parent=1 // pred_check
      _
    $region27: #{tpu_custom_call.1} parent=1 // pred_check_branch
      %49 = sbr.rel (0) target = $region29
    $region28: #{tpu_custom_call.1} parent=1 // pred_region
      %51 = dma.done [#allocation3], 2048
    $region29: #{tpu_custom_call.1} parent=1 // pred_fallthru
      _
    // Predicated region
    $region30: #{tpu_custom_call.1} parent=1 // pred_check
      _
    $region31: #{tpu_custom_call.1} parent=1 // pred_check_branch
      %53 = sbr.rel (0) target = $region33
    $region32: #{tpu_custom_call.1} parent=1 // pred_region
      %55 = dma.done [#allocation6], 2048
    $region33: #{tpu_custom_call.1} parent=1 // pred_fallthru
      _
    %v56 = vld [vmem:[%s0] sm:$0xff]
    %v57 = vld [vmem:[%s1] sm:$0x1]
    %v58 = vld [vmem:[%s1 + $0x1] sm:$0x1]
    %60 = vset.pattern.permute.xlu0 0
    %61 = vperm.xlu0 %60, %v56
    %v62 = vpop.permute.xlu0 %61
    %v64 = vperm.slane %v57, 0
    %v65 = vmul.f32 %v62, %v64
    %v66 = vperm.slane %v58, 0
    %v67 = vadd.f32 %v65, %v66
    %v68 = vand.u32 2147483647, %v67
    %vm69 = vcmp.le.f32.partialorder %v68, 0.7853982
    %vm70 = vcmp.lt.s32.totalorder %v67, 0
    %v71 = vand.u32 %v67, 2139095040
    %v72 = vshrl.u32 %v71, 23
    %v73 = vsub.s32 %v72, 127
    %v74 = vand.u32 2147483647, %v67
    %v75 = vand.u32 %v74, 8388607
    %v76 = vor.u32 %v75, 8388608
    %v77 = vsub.s32 0, %v76
    %v78 = vadd.s32 %v73, 1
    %vm79 = vcmp.gt.s32.totalorder %v78, 0
    %v80 = vsel %vm79, %v78, 0
    %v81 = vshrl.u32 %v80, 5
    %v82 = vand.u32 %v80, 31
    %v83 = vsub.s32 32, %v82
    %v84 = vshrl.u32 683565275, %v83
    %v85 = vshll.u32 683565275, %v82
    %v86 = vshrl.u32 2475754826, %v83
    %v87 = vor.u32 %v85, %v86
    %v88 = vshll.u32 2475754826, %v82
    %v89 = vshrl.u32 2131351028, %v83
    %v90 = vor.u32 %v88, %v89
    %v91 = vshll.u32 2131351028, %v82
    %v92 = vshrl.u32 2102212464, %v83
    %v93 = vor.u32 %v91, %v92
    %v94 = vshll.u32 2102212464, %v82
    %v95 = vshrl.u32 920167782, %v83
    %v96 = vor.u32 %v94, %v95
    %v97 = vshll.u32 920167782, %v82
    %v98 = vshrl.u32 1326507024, %v83
    %v99 = vor.u32 %v97, %v98
    %vm100 = vcmp.lt.s32.totalorder %v81, 1
    %vm101 = vcmp.lt.s32.totalorder %v81, 2
    %vm102 = vcmp.lt.s32.totalorder %v81, 3
    %vm103 = vcmp.lt.s32.totalorder %v81, 4
    %v104 = vsel %vm100, %v84, %v87
    %v105 = vsel %vm103, %v93, 2102212464
    %v106 = vsel %vm102, %v90, %v105
    %v107 = vsel %vm101, %v104, %v106
    %v108 = vsel %vm100, %v87, %v90
    %v109 = vsel %vm103, %v96, 920167782
    %v110 = vsel %vm102, %v93, %v109
    %v111 = vsel %vm101, %v108, %v110
    %v112 = vsel %vm100, %v90, %v93
    %v113 = vsel %vm103, %v99, 1326507024
    %v114 = vsel %vm102, %v96, %v113
    %v115 = vsel %vm101, %v112, %v114
    %v116 = vshll.u32 %v76, 8
    %v117 = vand.u32 %v116, 65535
    %v118 = vshrl.u32 %v116, 16
    %v119 = vand.u32 %v115, 65535
    %v120 = vshrl.u32 %v115, 16
    %v121 = vmul.u32 %v117, %v119
    %v122 = vmul.u32 %v117, %v120
    %v123 = vmul.u32 %v118, %v119
    %v124 = vmul.u32 %v118, %v120
    %v125 = vshll.u32 %v122, 16
    %v126 = vshrl.u32 %v122, 16
    %v127 = vshll.u32 %v123, 16
    %v128 = vshrl.u32 %v123, 16
    %vm129 = vc.u32 %v121, %v125
    %v130 = vsel %vm129, 1, 0
    %v131 = vadd.s32 %v121, %v125
    %v132 = vadd.s32 %v124, %v130
    %vm133 = vc.u32 %v131, %v127
    %v134 = vsel %vm133, 1, 0
    %v135 = vadd.s32 %v131, %v127
    %v136 = vadd.s32 %v132, %v134
    %v137 = vadd.s32 %v136, %v126
    %v138 = vadd.s32 %v137, %v128
    %v139 = vand.u32 %v116, 65535
    %v140 = vshrl.u32 %v116, 16
    %v141 = vand.u32 %v111, 65535
    %v142 = vshrl.u32 %v111, 16
    %v143 = vmul.u32 %v139, %v141
    %v144 = vmul.u32 %v139, %v142
    %v145 = vmul.u32 %v140, %v141
    %v146 = vmul.u32 %v140, %v142
    %v147 = vshll.u32 %v144, 16
    %v148 = vshrl.u32 %v144, 16
    %v149 = vshll.u32 %v145, 16
    %v150 = vshrl.u32 %v145, 16
    %vm151 = vc.u32 %v143, %v147
    %v152 = vsel %vm151, 1, 0
    %v153 = vadd.s32 %v143, %v147
    %v154 = vadd.s32 %v146, %v152
    %vm155 = vc.u32 %v153, %v149
    %v156 = vsel %vm155, 1, 0
    %v157 = vadd.s32 %v153, %v149
    %v158 = vadd.s32 %v154, %v156
    %v159 = vadd.s32 %v158, %v148
    %v160 = vadd.s32 %v159, %v150
    %v161 = vmul.u32 %v116, %v107
    %v162 = vadd.s32 %v138, %v157
    %vm163 = vc.u32 %v138, %v157
    %v164 = vadd.s32 %v160, 1
    %v165 = vsel %vm163, %v164, %v160
    %v166 = vadd.s32 %v161, %v165
    %v167 = vadd.s32 %v166, 536870912
    %v168 = vshrl.u32 %v167, 30
    %v169 = vshll.u32 %v168, 30
    %v170 = vsub.s32 %v166, %v169
    %vm171 = vcmp.lt.s32.totalorder %v170, 0
    %v172 = vsub.s32 0, %v170
    %v173 = vsel %vm171, %v172, %v170
    %v174 = vclz %v173
    %v175 = vsub.s32 %v174, 2
    %vm176 = vcmp.gt.s32.totalorder 0, %v175
    %v177 = vsel %vm176, 0, %v175
    %v178 = vsub.s32 32, %v177
    %v179 = vshll.u32 %v170, %v177
    %v180 = vshrl.u32 %v162, %v178
    %v181 = vor.u32 %v179, %v180
    %v182 = vsub.s32 4294967266, %v177
    %v183 = vadd.s32 %v182, 127
    %v184 = vshll.u32 %v183, 23
    %v185 = vor.u32 4788187, %v184
    %v186 = vand.u32 2147483647, %v185
    %v188 = vcvt.s32.f32 %v181
    %v189 = vmul.f32 %v188, %v186
    %v190 = vxor.u32 %v189, 2147483648
    %v191 = vsel %vm70, %v190, %v189
    %v192 = vsub.s32 4, %v168
    %v193 = vsel %vm70, %v192, %v168
    %v194 = vsel %vm69, %v67, %v191
    %v195 = vsel %vm69, 0, %v193
    %v196 = vmul.f32 %v194, %v194
    %v197 = vmul.f32 %v196, -0.001358992
    %v198 = vadd.f32 %v197, 0.041655596
    %v199 = vmul.f32 %v196, %v198
    %v200 = vadd.f32 %v199, -0.4999988
    %v201 = vmul.f32 %v196, %v200
    %v202 = vadd.f32 1.0, %v201
    %v203 = vmul.f32 %v194, %v194
    %v204 = vmul.f32 %v203, -0.00019511016
    %v205 = vadd.f32 %v204, 0.008332121
    %v206 = vmul.f32 %v203, %v205
    %v207 = vadd.f32 %v206, -0.16666654
    %v208 = vmul.f32 %v203, %v207
    %v209 = vadd.f32 %v208, 1.0
    %v210 = vmul.f32 %v209, %v194
    %vm211 = vweird.f32 %v67
    %v212 = vadd.s32 %v195, 3
    %v213 = vand.u32 %v212, 3
    %vm214 = vcmp.lt.s32.totalorder %v213, 2
    %vm215 = vcmp.eq.s32.totalorder %v213, 0
    %v216 = vxor.u32 %v210, 2147483648
    %v217 = vsel %vm215, %v202, %v216
    %vm218 = vcmp.eq.s32.totalorder %v213, 2
    %v219 = vxor.u32 %v202, 2147483648
    %v220 = vsel %vm218, %v219, %v210
    %v221 = vsel %vm214, %v217, %v220
    %v222 = vsel %vm211, nan, %v221
    %v223 = vld [vmem:[#allocation2] sm:$0xff]
    %v224 = vld [vmem:[#allocation2 + $0x8] sm:$0xff]
    %v225 = vld [vmem:[#allocation2 + $0x10] sm:$0xff]
    %v226 = vld [vmem:[#allocation2 + $0x18] sm:$0xff]
    %v227 = vld [vmem:[#allocation2 + $0x20] sm:$0xff]
    %v228 = vld [vmem:[#allocation2 + $0x28] sm:$0xff]
    %v229 = vld [vmem:[#allocation2 + $0x30] sm:$0xff]
    %v230 = vld [vmem:[#allocation2 + $0x38] sm:$0xff]
    %v231 = vld [vmem:[#allocation2 + $0x40] sm:$0xff]
    %v232 = vld [vmem:[#allocation2 + $0x48] sm:$0xff]
    %v233 = vld [vmem:[#allocation2 + $0x50] sm:$0xff]
    %v234 = vld [vmem:[#allocation2 + $0x58] sm:$0xff]
    %v235 = vld [vmem:[#allocation2 + $0x60] sm:$0xff]
    %v236 = vld [vmem:[#allocation2 + $0x68] sm:$0xff]
    %v237 = vld [vmem:[#allocation2 + $0x70] sm:$0xff]
    %v238 = vld [vmem:[#allocation2 + $0x78] sm:$0xff]
    %v239 = vld [vmem:[%s3] sm:$0x1]
    %v241 = vperm.slane %v239, 0
    %243 = vmatpush.msra.mxu0 %v238
    %244 = vmatpush.msra.mxu0 %v237
    %245 = vmatpush.msra.mxu0 %v236
    %246 = vmatpush.msra.mxu0 %v235
    %247 = vmatpush.msra.mxu0 %v234
    %248 = vmatpush.msra.mxu0 %v233
    %249 = vmatpush.msra.mxu0 %v232
    %250 = vmatpush.msra.mxu0 %v231
    %251 = vmatpush.msra.mxu0 %v230
    %252 = vmatpush.msra.mxu0 %v229
    %253 = vmatpush.msra.mxu0 %v228
    %254 = vmatpush.msra.mxu0 %v227
    %255 = vmatpush.msra.mxu0 %v226
    %256 = vmatpush.msra.mxu0 %v225
    %257 = vmatpush.msra.mxu0 %v224
    %258 = vmatpush.msra.mxu0 %v223
    %259 = vmatmul.f32.gmra.mxu0 %v222
    %v260 = vpop.f32.mrf.mxu0
    %v261 = vadd.f32 %v241, %v260
    %262 = vdwg.mxu0
    %v263 = vmul.f32 %v261, 0.2
    %v264 = vmax.f32 %v261, %v263
    %v265 = vld [vmem:[#allocation5] sm:$0xff]
    %v266 = vld [vmem:[#allocation5 + $0x8] sm:$0xff]
    %v267 = vld [vmem:[#allocation5 + $0x10] sm:$0xff]
    %v268 = vld [vmem:[#allocation5 + $0x18] sm:$0xff]
    %v269 = vld [vmem:[#allocation5 + $0x20] sm:$0xff]
    %v270 = vld [vmem:[#allocation5 + $0x28] sm:$0xff]
    %v271 = vld [vmem:[#allocation5 + $0x30] sm:$0xff]
    %v272 = vld [vmem:[#allocation5 + $0x38] sm:$0xff]
    %v273 = vld [vmem:[#allocation5 + $0x40] sm:$0xff]
    %v274 = vld [vmem:[#allocation5 + $0x48] sm:$0xff]
    %v275 = vld [vmem:[#allocation5 + $0x50] sm:$0xff]
    %v276 = vld [vmem:[#allocation5 + $0x58] sm:$0xff]
    %v277 = vld [vmem:[#allocation5 + $0x60] sm:$0xff]
    %v278 = vld [vmem:[#allocation5 + $0x68] sm:$0xff]
    %v279 = vld [vmem:[#allocation5 + $0x70] sm:$0xff]
    %v280 = vld [vmem:[#allocation5 + $0x78] sm:$0xff]
    %v281 = vld [vmem:[%s5] sm:$0x1]
    %v283 = vperm.slane %v281, 0
    %285 = vmatpush.msra.mxu0 %v280
    %286 = vmatpush.msra.mxu0 %v279
    %287 = vmatpush.msra.mxu0 %v278
    %288 = vmatpush.msra.mxu0 %v277
    %289 = vmatpush.msra.mxu0 %v276
    %290 = vmatpush.msra.mxu0 %v275
    %291 = vmatpush.msra.mxu0 %v274
    %292 = vmatpush.msra.mxu0 %v273
    %293 = vmatpush.msra.mxu0 %v272
    %294 = vmatpush.msra.mxu0 %v271
    %295 = vmatpush.msra.mxu0 %v270
    %296 = vmatpush.msra.mxu0 %v269
    %297 = vmatpush.msra.mxu0 %v268
    %298 = vmatpush.msra.mxu0 %v267
    %299 = vmatpush.msra.mxu0 %v266
    %300 = vmatpush.msra.mxu0 %v265
    %301 = vmatmul.f32.gmra.mxu0 %v264
    %v302 = vpop.f32.mrf.mxu0
    %v303 = vadd.f32 %v283, %v302
    %304 = vdwg.mxu0
    %v305 = vmul.f32 %v303, 0.2
    %v306 = vmax.f32 %v303, %v305
    %307 = vst [vmem:[#allocation7] sm:$0xff] %v306
    // Predicated region
    $region34: #{tpu_custom_call.1} parent=1 // pred_check
      _
    $region35: #{tpu_custom_call.1} parent=1 // pred_check_branch
      %309 = sbr.rel (0) target = $region37
    $region36: #{tpu_custom_call.1} parent=1 // pred_region
      %311 = vsyncadd [#allocation4], 0
      %s313 = sshll.u32 [#allocation7], 4
      %s314 = int_to_ptr.vmem [resolvable:$true] %s313
      %s315 = sshll.u32 %s6, 4
      %s316 = int_to_ptr.hbm [resolvable:$true] %s315
      %318 = dma.vmem_to_hbm [thread:$0]  %s314, 128, %s316, [#allocation4]
    $region37: #{tpu_custom_call.1} parent=1 // pred_fallthru
      _
    // Predicated region
    $region38: #{tpu_custom_call.1} parent=1 // pred_check
      _
    $region39: #{tpu_custom_call.1} parent=1 // pred_check_branch
      %320 = sbr.rel (0) target = $region41
    $region40: #{tpu_custom_call.1} parent=1 // pred_region
      %322 = dma.done [#allocation4], 128
    $region41: #{tpu_custom_call.1} parent=1 // pred_fallthru
      _
    %323 = vsyncpa [#allocation3], 1
    %324 = vsyncpa [#allocation6], 1
    %325 = vsyncpa [#allocation4], 1

</llo_original>
